<compile_context>
chip_gen: v6e
topology: v6e:2x2x1
jax: 0.10.0
libtpu: 0.0.40
codegen_flags: <defaults>
</compile_context>

<pallas_src>
import functools

import jax
import jax.numpy as jnp
from jax import lax
from jax.experimental import pallas as pl
from jax.experimental.pallas import tpu as pltpu

POOL = 4  # nn.AvgPool2d(4): kernel = stride = 4


def _l_spa_kernel(org_ref, enh_ref, o_ref, *, C, H, W, inv_denom):
    # org_ref / enh_ref: (C, H, W) VMEM blocks (one image per grid step).
    b = pl.program_id(0)

    # ---- channel sum of (org - enhance) ----
    # Everything up to the squaring is linear, so pool the difference directly
    # and defer all normalisation to a single scale at the end.
    diff = org_ref[...].astype(jnp.float32) - enh_ref[...].astype(jnp.float32)
    s = jnp.sum(diff, axis=0)                                    # (H, W)

    # ---- 4x4 block sums kept in place on the (H, W) canvas ----
    # After the two shift-accumulate passes, the element at an anchor position
    # (4i, 4j) holds the sum over the 4x4 block whose top-left corner is there.
    sh = s
    for k in range(1, POOL):
        sh = sh + jnp.roll(s, -k, axis=1)
    sv = sh
    for k in range(1, POOL):
        sv = sv + jnp.roll(sh, -k, axis=0)

    # pooled channel-mean difference (valid at anchor positions only)
    d = sv * (1.0 / float(C * POOL * POOL))

    col = lax.broadcasted_iota(jnp.int32, (H, W), 1)
    row = lax.broadcasted_iota(jnp.int32, (H, W), 0)
    zero = jnp.zeros((), jnp.float32)

    # Pooled-space neighbours live POOL pixels away on the canvas; zero padding
    # at the borders reproduces F.conv2d(..., padding=1) with the 3x3 kernels.
    d_left = jnp.where(col < POOL, zero, jnp.roll(d, POOL, axis=1))
    d_right = jnp.where(col >= W - POOL, zero, jnp.roll(d, -POOL, axis=1))
    d_up = jnp.where(row < POOL, zero, jnp.roll(d, POOL, axis=0))
    d_down = jnp.where(row >= H - POOL, zero, jnp.roll(d, -POOL, axis=0))

    e = ((d - d_left) ** 2 + (d - d_right) ** 2
         + (d - d_up) ** 2 + (d - d_down) ** 2)

    anchor = ((col % POOL) == 0) & ((row % POOL) == 0)
    e_sum = jnp.sum(jnp.where(anchor, e, zero))

    o_ref[b] = e_sum * inv_denom


def l_spa(org, enhance):
    assert org.shape == enhance.shape and org.ndim == 4
    B, C, H, W = org.shape
    assert H % POOL == 0 and W % POOL == 0, "H, W must be divisible by 4 (AvgPool2d(4))"
    HP, WP = H // POOL, W // POOL
    assert HP >= 2 and WP >= 2, "pooled spatial dims must be >= 2"
    # TODO(synk): for very large C*H*W a single image may exceed VMEM; would need
    # an extra spatial grid axis + per-tile partial sums.

    kernel = functools.partial(_l_spa_kernel, C=C, H=H, W=W,
                               inv_denom=1.0 / float(B * HP * WP))

    partials = pl.pallas_call(
        kernel,
        out_shape=jax.ShapeDtypeStruct((B,), jnp.float32),
        grid_spec=pltpu.PrefetchScalarGridSpec(
            num_scalar_prefetch=0,
            grid=(B,),
            in_specs=[
                pl.BlockSpec((None, C, H, W), lambda b: (b, 0, 0, 0)),
                pl.BlockSpec((None, C, H, W), lambda b: (b, 0, 0, 0)),
            ],
            out_specs=pl.BlockSpec(memory_space=pltpu.MemorySpace.SMEM),
        ),
        compiler_params=pltpu.CompilerParams(
            dimension_semantics=("arbitrary",),  # shared unblocked scalar output
        ),
    )(org, enhance)
    return jnp.sum(partials)


# ---- plain-JAX reference, faithful to the PyTorch forward ----
def _shift4(x):
    xl = jnp.pad(x, ((0, 0), (0, 0), (0, 0), (1, 0)))[:, :, :, :-1]  # x[.., j-1]
    xr = jnp.pad(x, ((0, 0), (0, 0), (0, 0), (0, 1)))[:, :, :, 1:]   # x[.., j+1]
    xu = jnp.pad(x, ((0, 0), (0, 0), (1, 0), (0, 0)))[:, :, :-1, :]  # x[.., i-1, :]
    xd = jnp.pad(x, ((0, 0), (0, 0), (0, 1), (0, 0)))[:, :, 1:, :]   # x[.., i+1, :]
    return xl, xr, xu, xd


def l_spa_reference(org, enhance):
    org_mean = jnp.mean(org, axis=1, keepdims=True)
    enh_mean = jnp.mean(enhance, axis=1, keepdims=True)
    B, _, H, W = org_mean.shape
    HP, WP = H // POOL, W // POOL
    org_pool = org_mean.reshape(B, 1, HP, POOL, WP, POOL).mean(axis=(3, 5))
    enh_pool = enh_mean.reshape(B, 1, HP, POOL, WP, POOL).mean(axis=(3, 5))
    ol, orr, ou, od = _shift4(org_pool)
    el, er, eu, ed = _shift4(enh_pool)
    d_left = (org_pool - ol) - (enh_pool - el)
    d_right = (org_pool - orr) - (enh_pool - er)
    d_up = (org_pool - ou) - (enh_pool - eu)
    d_down = (org_pool - od) - (enh_pool - ed)
    e = d_left ** 2 + d_right ** 2 + d_up ** 2 + d_down ** 2
    return jnp.mean(e)


if __name__ == "__main__":
    key = jax.random.PRNGKey(0)
    k1, k2 = jax.random.split(key)
    shape = (2, 4, 16, 16)  # (B, C, H, W)
    org = jax.random.uniform(k1, shape, dtype=jnp.float32)       # image-like inputs in [0, 1)
    enhance = jax.random.uniform(k2, shape, dtype=jnp.float32)

    loss = jax.jit(l_spa)(org, enhance)
    jax.block_until_ready(loss)

    ref = l_spa_reference(org, enhance)
    assert jnp.allclose(loss, ref, rtol=1e-5, atol=1e-6), (loss, ref)
    print("KERNEL_OK")
</pallas_src>

<mosaic_0001>
module attributes {stable_mosaic.version = 11 : i64} {
  func.func @_l_spa_kernel(%arg0: i32, %arg1: memref<1x4x16x16xf32, #tpu.memory_space<vmem>>, %arg2: memref<1x4x16x16xf32, #tpu.memory_space<vmem>>, %arg3: memref<2xf32, #tpu.memory_space<smem>>) attributes {dimension_semantics = [#tpu.dimension_semantics<arbitrary>], iteration_bounds = array<i64: 2>, scalar_prefetch = 0 : i64, scratch_operands = 0 : i64, tpu.core_type = #tpu.core_type<tc>, window_params = [{transform_indices = @transform_0, window_bounds = array<i64: 1, 4, 16, 16>}, {transform_indices = @transform_1, window_bounds = array<i64: 1, 4, 16, 16>}, {transform_indices = @transform_2, window_bounds = array<i64: 2>}]} {
    %c0 = arith.constant 0 : index
    %c0_0 = arith.constant 0 : index
    %c0_1 = arith.constant 0 : index
    %c0_2 = arith.constant 0 : index
    %0 = vector.load %arg1[%c0, %c0_0, %c0_1, %c0_2] : memref<1x4x16x16xf32, #tpu.memory_space<vmem>>, vector<1x4x16x16xf32>
    %1 = vector.shape_cast %0 : vector<1x4x16x16xf32> to vector<4x16x16xf32>
    %c0_3 = arith.constant 0 : index
    %c0_4 = arith.constant 0 : index
    %c0_5 = arith.constant 0 : index
    %c0_6 = arith.constant 0 : index
    %2 = vector.load %arg2[%c0_3, %c0_4, %c0_5, %c0_6] : memref<1x4x16x16xf32, #tpu.memory_space<vmem>>, vector<1x4x16x16xf32>
    %3 = vector.shape_cast %2 : vector<1x4x16x16xf32> to vector<4x16x16xf32>
    %4 = arith.subf %1, %3 : vector<4x16x16xf32>
    %cst = arith.constant dense<0.000000e+00> : vector<16x16xf32>
    %5 = vector.multi_reduction <add>, %4, %cst [0] : vector<4x16x16xf32> to vector<16x16xf32>
    %6 = vector.extract_strided_slice %5 {offsets = [0, 1], sizes = [16, 15], strides = [1, 1]} : vector<16x16xf32> to vector<16x15xf32>
    %7 = vector.extract_strided_slice %5 {offsets = [0, 0], sizes = [16, 1], strides = [1, 1]} : vector<16x16xf32> to vector<16x1xf32>
    %8 = tpu.concatenate %6, %7 in 1 : vector<16x15xf32>, vector<16x1xf32> -> vector<16x16xf32>
    %9 = arith.addf %5, %8 : vector<16x16xf32>
    %10 = vector.extract_strided_slice %5 {offsets = [0, 2], sizes = [16, 14], strides = [1, 1]} : vector<16x16xf32> to vector<16x14xf32>
    %11 = vector.extract_strided_slice %5 {offsets = [0, 0], sizes = [16, 2], strides = [1, 1]} : vector<16x16xf32> to vector<16x2xf32>
    %12 = tpu.concatenate %10, %11 in 1 : vector<16x14xf32>, vector<16x2xf32> -> vector<16x16xf32>
    %13 = arith.addf %9, %12 : vector<16x16xf32>
    %14 = vector.extract_strided_slice %5 {offsets = [0, 3], sizes = [16, 13], strides = [1, 1]} : vector<16x16xf32> to vector<16x13xf32>
    %15 = vector.extract_strided_slice %5 {offsets = [0, 0], sizes = [16, 3], strides = [1, 1]} : vector<16x16xf32> to vector<16x3xf32>
    %16 = tpu.concatenate %14, %15 in 1 : vector<16x13xf32>, vector<16x3xf32> -> vector<16x16xf32>
    %17 = arith.addf %13, %16 : vector<16x16xf32>
    %18 = vector.extract_strided_slice %17 {offsets = [1, 0], sizes = [15, 16], strides = [1, 1]} : vector<16x16xf32> to vector<15x16xf32>
    %19 = vector.extract_strided_slice %17 {offsets = [0, 0], sizes = [1, 16], strides = [1, 1]} : vector<16x16xf32> to vector<1x16xf32>
    %20 = tpu.concatenate %18, %19 in 0 : vector<15x16xf32>, vector<1x16xf32> -> vector<16x16xf32>
    %21 = arith.addf %17, %20 : vector<16x16xf32>
    %22 = vector.extract_strided_slice %17 {offsets = [2, 0], sizes = [14, 16], strides = [1, 1]} : vector<16x16xf32> to vector<14x16xf32>
    %23 = vector.extract_strided_slice %17 {offsets = [0, 0], sizes = [2, 16], strides = [1, 1]} : vector<16x16xf32> to vector<2x16xf32>
    %24 = tpu.concatenate %22, %23 in 0 : vector<14x16xf32>, vector<2x16xf32> -> vector<16x16xf32>
    %25 = arith.addf %21, %24 : vector<16x16xf32>
    %26 = vector.extract_strided_slice %17 {offsets = [3, 0], sizes = [13, 16], strides = [1, 1]} : vector<16x16xf32> to vector<13x16xf32>
    %27 = vector.extract_strided_slice %17 {offsets = [0, 0], sizes = [3, 16], strides = [1, 1]} : vector<16x16xf32> to vector<3x16xf32>
    %28 = tpu.concatenate %26, %27 in 0 : vector<13x16xf32>, vector<3x16xf32> -> vector<16x16xf32>
    %29 = arith.addf %25, %28 : vector<16x16xf32>
    %cst_7 = arith.constant 1.562500e-02 : f32
    %30 = vector.broadcast %cst_7 : f32 to vector<16x16xf32>
    %31 = arith.mulf %29, %30 : vector<16x16xf32>
    %32 = tpu.iota {dimensions = array<i32: 1>} : vector<16x16xi32>
    %33 = tpu.iota {dimensions = array<i32: 0>} : vector<16x16xi32>
    %c4_i32 = arith.constant 4 : i32
    %34 = vector.broadcast %c4_i32 : i32 to vector<16x16xi32>
    %35 = arith.cmpi slt, %32, %34 : vector<16x16xi32>
    %36 = vector.extract_strided_slice %31 {offsets = [0, 12], sizes = [16, 4], strides = [1, 1]} : vector<16x16xf32> to vector<16x4xf32>
    %37 = vector.extract_strided_slice %31 {offsets = [0, 0], sizes = [16, 12], strides = [1, 1]} : vector<16x16xf32> to vector<16x12xf32>
    %38 = tpu.concatenate %36, %37 in 1 : vector<16x4xf32>, vector<16x12xf32> -> vector<16x16xf32>
    %cst_8 = arith.constant 0.000000e+00 : f32
    %39 = vector.broadcast %cst_8 : f32 to vector<16x16xf32>
    %40 = arith.select %35, %39, %38 : vector<16x16xi1>, vector<16x16xf32>
    %c12_i32 = arith.constant 12 : i32
    %41 = vector.broadcast %c12_i32 : i32 to vector<16x16xi32>
    %42 = arith.cmpi sge, %32, %41 : vector<16x16xi32>
    %43 = vector.extract_strided_slice %31 {offsets = [0, 4], sizes = [16, 12], strides = [1, 1]} : vector<16x16xf32> to vector<16x12xf32>
    %44 = vector.extract_strided_slice %31 {offsets = [0, 0], sizes = [16, 4], strides = [1, 1]} : vector<16x16xf32> to vector<16x4xf32>
    %45 = tpu.concatenate %43, %44 in 1 : vector<16x12xf32>, vector<16x4xf32> -> vector<16x16xf32>
    %cst_9 = arith.constant 0.000000e+00 : f32
    %46 = vector.broadcast %cst_9 : f32 to vector<16x16xf32>
    %47 = arith.select %42, %46, %45 : vector<16x16xi1>, vector<16x16xf32>
    %c4_i32_10 = arith.constant 4 : i32
    %48 = vector.broadcast %c4_i32_10 : i32 to vector<16x16xi32>
    %49 = arith.cmpi slt, %33, %48 : vector<16x16xi32>
    %50 = vector.extract_strided_slice %31 {offsets = [12, 0], sizes = [4, 16], strides = [1, 1]} : vector<16x16xf32> to vector<4x16xf32>
    %51 = vector.extract_strided_slice %31 {offsets = [0, 0], sizes = [12, 16], strides = [1, 1]} : vector<16x16xf32> to vector<12x16xf32>
    %52 = tpu.concatenate %50, %51 in 0 : vector<4x16xf32>, vector<12x16xf32> -> vector<16x16xf32>
    %cst_11 = arith.constant 0.000000e+00 : f32
    %53 = vector.broadcast %cst_11 : f32 to vector<16x16xf32>
    %54 = arith.select %49, %53, %52 : vector<16x16xi1>, vector<16x16xf32>
    %c12_i32_12 = arith.constant 12 : i32
    %55 = vector.broadcast %c12_i32_12 : i32 to vector<16x16xi32>
    %56 = arith.cmpi sge, %33, %55 : vector<16x16xi32>
    %57 = vector.extract_strided_slice %31 {offsets = [4, 0], sizes = [12, 16], strides = [1, 1]} : vector<16x16xf32> to vector<12x16xf32>
    %58 = vector.extract_strided_slice %31 {offsets = [0, 0], sizes = [4, 16], strides = [1, 1]} : vector<16x16xf32> to vector<4x16xf32>
    %59 = tpu.concatenate %57, %58 in 0 : vector<12x16xf32>, vector<4x16xf32> -> vector<16x16xf32>
    %cst_13 = arith.constant 0.000000e+00 : f32
    %60 = vector.broadcast %cst_13 : f32 to vector<16x16xf32>
    %61 = arith.select %56, %60, %59 : vector<16x16xi1>, vector<16x16xf32>
    %62 = arith.subf %31, %40 : vector<16x16xf32>
    %63 = arith.mulf %62, %62 : vector<16x16xf32>
    %64 = arith.subf %31, %47 : vector<16x16xf32>
    %65 = arith.mulf %64, %64 : vector<16x16xf32>
    %66 = arith.addf %63, %65 : vector<16x16xf32>
    %67 = arith.subf %31, %54 : vector<16x16xf32>
    %68 = arith.mulf %67, %67 : vector<16x16xf32>
    %69 = arith.addf %66, %68 : vector<16x16xf32>
    %70 = arith.subf %31, %61 : vector<16x16xf32>
    %71 = arith.mulf %70, %70 : vector<16x16xf32>
    %72 = arith.addf %69, %71 : vector<16x16xf32>
    %c4_i32_14 = arith.constant 4 : i32
    %c0_i32 = arith.constant 0 : i32
    %73 = arith.cmpi eq, %c4_i32_14, %c0_i32 : i32
    %c1_i32 = arith.constant 1 : i32
    %74 = arith.select %73, %c1_i32, %c4_i32_14 : i32
    %75 = vector.broadcast %74 : i32 to vector<16x16xi32>
    %76 = arith.remsi %32, %75 : vector<16x16xi32>
    %c0_i32_15 = arith.constant 0 : i32
    %77 = vector.broadcast %c0_i32_15 : i32 to vector<16x16xi32>
    %78 = arith.cmpi ne, %76, %77 : vector<16x16xi32>
    %c0_i32_16 = arith.constant 0 : i32
    %79 = vector.broadcast %c0_i32_16 : i32 to vector<16x16xi32>
    %80 = arith.cmpi slt, %76, %79 : vector<16x16xi32>
    %c0_i32_17 = arith.constant 0 : i32
    %81 = arith.cmpi slt, %74, %c0_i32_17 : i32
    %82 = vector.broadcast %81 : i1 to vector<16x16xi1>
    %83 = vector.broadcast %82 : vector<16x16xi1> to vector<16x16xi1>
    %84 = arith.xori %80, %83 : vector<16x16xi1>
    %85 = arith.andi %84, %78 : vector<16x16xi1>
    %86 = vector.broadcast %74 : i32 to vector<16x16xi32>
    %87 = arith.addi %76, %86 : vector<16x16xi32>
    %88 = arith.select %85, %87, %76 : vector<16x16xi1>, vector<16x16xi32>
    %c0_i32_18 = arith.constant 0 : i32
    %89 = vector.broadcast %c0_i32_18 : i32 to vector<16x16xi32>
    %90 = arith.cmpi eq, %88, %89 : vector<16x16xi32>
    %c4_i32_19 = arith.constant 4 : i32
    %c0_i32_20 = arith.constant 0 : i32
    %91 = arith.cmpi eq, %c4_i32_19, %c0_i32_20 : i32
    %c1_i32_21 = arith.constant 1 : i32
    %92 = arith.select %91, %c1_i32_21, %c4_i32_19 : i32
    %93 = vector.broadcast %92 : i32 to vector<16x16xi32>
    %94 = arith.remsi %33, %93 : vector<16x16xi32>
    %c0_i32_22 = arith.constant 0 : i32
    %95 = vector.broadcast %c0_i32_22 : i32 to vector<16x16xi32>
    %96 = arith.cmpi ne, %94, %95 : vector<16x16xi32>
    %c0_i32_23 = arith.constant 0 : i32
    %97 = vector.broadcast %c0_i32_23 : i32 to vector<16x16xi32>
    %98 = arith.cmpi slt, %94, %97 : vector<16x16xi32>
    %c0_i32_24 = arith.constant 0 : i32
    %99 = arith.cmpi slt, %92, %c0_i32_24 : i32
    %100 = vector.broadcast %99 : i1 to vector<16x16xi1>
    %101 = vector.broadcast %100 : vector<16x16xi1> to vector<16x16xi1>
    %102 = arith.xori %98, %101 : vector<16x16xi1>
    %103 = arith.andi %102, %96 : vector<16x16xi1>
    %104 = vector.broadcast %92 : i32 to vector<16x16xi32>
    %105 = arith.addi %94, %104 : vector<16x16xi32>
    %106 = arith.select %103, %105, %94 : vector<16x16xi1>, vector<16x16xi32>
    %c0_i32_25 = arith.constant 0 : i32
    %107 = vector.broadcast %c0_i32_25 : i32 to vector<16x16xi32>
    %108 = arith.cmpi eq, %106, %107 : vector<16x16xi32>
    %109 = arith.andi %90, %108 : vector<16x16xi1>
    %cst_26 = arith.constant 0.000000e+00 : f32
    %110 = vector.broadcast %cst_26 : f32 to vector<16x16xf32>
    %111 = arith.select %109, %72, %110 : vector<16x16xi1>, vector<16x16xf32>
    %112 = vector.shape_cast %111 : vector<16x16xf32> to vector<1x16x16xf32>
    %cst_27 = arith.constant dense<0.000000e+00> : vector<1xf32>
    %113 = vector.multi_reduction <add>, %112, %cst_27 [1, 2] : vector<1x16x16xf32> to vector<1xf32>
    %114 = vector.shape_cast %113 : vector<1xf32> to vector<1x1x1xf32>
    %115 = vector.extract %114[0, 0, 0] : f32 from vector<1x1x1xf32>
    %cst_28 = arith.constant 3.125000e-02 : f32
    %116 = arith.mulf %115, %cst_28 : f32
    %117 = arith.index_cast %arg0 : i32 to index
    %118 = memref.load %arg3[%117] : memref<2xf32, #tpu.memory_space<smem>>
    memref.store %116, %arg3[%117] : memref<2xf32, #tpu.memory_space<smem>>
    return
  }
  func.func @transform_0(%arg0: i32) -> (i32, i32, i32, i32) {
    %c0_i32 = arith.constant 0 : i32
    %c0_i32_0 = arith.constant 0 : i32
    %c0_i32_1 = arith.constant 0 : i32
    %c0_i32_2 = arith.constant 0 : i32
    return %arg0, %c0_i32, %c0_i32_0, %c0_i32_1 : i32, i32, i32, i32
  }
  func.func @transform_1(%arg0: i32) -> (i32, i32, i32, i32) {
    %c0_i32 = arith.constant 0 : i32
    %c0_i32_0 = arith.constant 0 : i32
    %c0_i32_1 = arith.constant 0 : i32
    %c0_i32_2 = arith.constant 0 : i32
    return %arg0, %c0_i32, %c0_i32_0, %c0_i32_1 : i32, i32, i32, i32
  }
  func.func @transform_2(%arg0: i32) -> i32 {
    %c0_i32 = arith.constant 0 : i32
    %c0_i32_0 = arith.constant 0 : i32
    return %c0_i32 : i32
  }
}

</mosaic_0001>

<llo_original>
// kernel: l_spa.1
$region0: #{l_spa.1}
  #allocation0 [shape = 'u32[]', space=smem, size = 0x4, offset = 0x4, fixed_abs, tag = 'smem constant byte address 0x4 - core index']
  #allocation1 [shape = 'u32[144,128]{1,0:T(1,128)}', space=vmem, size = 0x12000, scoped, tag = 'internal scratch']
  %s0 = inlined_call_operand.hbm [shape: f32[2,4,16,16], index: 0, kind: input, shape index: {}]
  %s1 = inlined_call_operand.hbm [shape: f32[2,4,16,16], index: 1, kind: input, shape index: {}]
  %s2 = inlined_call_operand.vmem [shape: f32[2], index: 2, kind: output, shape index: {}]
  %s3 = sld [smem:[#allocation0]]
  $region49: #{l_spa.1} parent=0
    _
  %s5 = ssub.s32 1, %s3
  %s6 = scalar_select 0, %s5, %s3
  $region1: #{l_spa.1} parent=0
    #allocation2 [shape = 'u8[65536]{0}', space=vmem, size = 0x10000, scoped, tag = 'input window, operand 0']
    #allocation3 [shape = 's32[2]{0}', space=sflag, size = 0x8, scoped, tag = 'scoped memory for l_spa.1']
    #allocation4 [shape = 's32[2]{0}', space=sflag, size = 0x8, scoped, tag = 'scoped memory for l_spa.1']
    #allocation5 [shape = 'u8[65536]{0}', space=vmem, size = 0x10000, scoped, tag = 'input window, operand 1']
    #allocation6 [shape = 's32[2]{0}', space=sflag, size = 0x8, scoped, tag = 'scoped memory for l_spa.1']
    #allocation7 [shape = 'u8[512]{0}', space=smem, size = 0x200, scoped, tag = 'output window, operand 0, single buffered']
    %7 = vsyncpa [#allocation3], 0
    %s8 = scalar_lea.sflag [#allocation3], 1
    %9 = vsyncpa %s8, 0
    %10 = vsyncpa [#allocation6], 0
    %s11 = scalar_lea.sflag [#allocation6], 1
    %12 = vsyncpa %s11, 0
    %13 = vsyncpa [#allocation4], 0
    loop: start=0, step=1, limit=4
    $region2: #{l_spa.1} parent=1 // loop_pre_header
      _
    $region3: #{l_spa.1} parent=1 // loop_header
      %s15 = sphi 0, %s19
      %p16 = scmp.ge.s32.totalorder %s15, 4
      %s25 = sphi 0, %s27
      %s28 = sphi 0, %s25
      %s29 = sphi 0, %s28
      %s45 = sphi 0, %s29
      %s51 = sphi 0, %s53
      %s54 = sphi 0, %s51
      %s55 = sphi 0, %s54
      %s71 = sphi 0, %s55
      %s75 = sphi 0, %s75
      %s77 = sphi 0, %s75
      %s78 = sphi 0, %s77
      %s92 = sphi 0, %s78
    $region4: #{l_spa.1} parent=1 // loop_header_branch
      %18 = sbr.rel (%p16) target = $region8
    $region5: #{l_spa.1} parent=1 // loop_body
      %s20 = ssub.s32 %s15, 1
      %s21 = ssub.s32 %s15, 2
      %s22 = sadd.s32 %s15, 1
      %s23 = ssub.s32 %s15, %s22
      %p24 = scmp.eq.s32.totalorder %s23, 0
      %s26 = sadd.s32 %s25, 1
      %s27 = scalar_select %p24, %s25, %s26
      %p30 = pneg %p24
      %p31 = scmp.eq.s32.totalorder %s15, 1
      %p32 = por %p30, %p31
      %p33 = scmp.ne.s32.totalorder %s25, %s28
      %p34 = scmp.eq.s32.totalorder %s15, 0
      %p35 = por %p33, %p34
      %p36 = scmp.ne.s32.totalorder %s25, %s28
      %p37 = scmp.eq.s32.totalorder %s20, 1
      %p38 = por %p36, %p37
      %p39 = scmp.ne.s32.totalorder %s28, %s29
      %p40 = scmp.eq.s32.totalorder %s20, 0
      %p41 = por %p39, %p40
      %p42 = scmp.ne.s32.totalorder %s28, %s29
      %p43 = scmp.eq.s32.totalorder %s21, 1
      %p44 = por %p42, %p43
      %p46 = scmp.ne.s32.totalorder %s29, %s45
      %p47 = scmp.eq.s32.totalorder %s21, 0
      %p48 = por %p46, %p47
      %s49 = ssub.s32 %s15, %s22
      %p50 = scmp.eq.s32.totalorder %s49, 0
      %s52 = sadd.s32 %s51, 1
      %s53 = scalar_select %p50, %s51, %s52
      %p56 = pneg %p50
      %p57 = scmp.eq.s32.totalorder %s15, 1
      %p58 = por %p56, %p57
      %p59 = scmp.ne.s32.totalorder %s51, %s54
      %p60 = scmp.eq.s32.totalorder %s15, 0
      %p61 = por %p59, %p60
      %p62 = scmp.ne.s32.totalorder %s51, %s54
      %p63 = scmp.eq.s32.totalorder %s20, 1
      %p64 = por %p62, %p63
      %p65 = scmp.ne.s32.totalorder %s54, %s55
      %p66 = scmp.eq.s32.totalorder %s20, 0
      %p67 = por %p65, %p66
      %p68 = scmp.ne.s32.totalorder %s54, %s55
      %p69 = scmp.eq.s32.totalorder %s21, 1
      %p70 = por %p68, %p69
      %p72 = scmp.ne.s32.totalorder %s55, %s71
      %p73 = scmp.eq.s32.totalorder %s21, 0
      %p74 = por %p72, %p73
      %s76 = sadd.s32 %s75, 1
      %p79 = scmp.eq.s32.totalorder %s15, 1
      %p80 = scmp.ne.s32.totalorder %s75, %s77
      %p81 = scmp.eq.s32.totalorder %s15, 0
      %p82 = por %p80, %p81
      %p83 = scmp.ne.s32.totalorder %s75, %s77
      %p84 = scmp.eq.s32.totalorder %s20, 1
      %p85 = por %p83, %p84
      %p86 = scmp.ne.s32.totalorder %s77, %s78
      %p87 = scmp.eq.s32.totalorder %s20, 0
      %p88 = por %p86, %p87
      %p89 = scmp.ne.s32.totalorder %s77, %s78
      %p90 = scmp.eq.s32.totalorder %s21, 1
      %p91 = por %p89, %p90
      %p93 = scmp.ne.s32.totalorder %s78, %s92
      %p94 = scmp.eq.s32.totalorder %s21, 0
      %p95 = por %p93, %p94
      %p96 = scmp.le.s32.totalorder 1, %s15
      %p97 = scmp.lt.s32.totalorder %s15, 3
      %p98 = pnand %p96, %p97
      %p99 = pneg %p98
      // Predicated region
      $region9: #{l_spa.1} parent=5 // pred_check
        _
      $region10: #{l_spa.1} parent=5 // pred_check_branch
        %101 = sbr.rel (%p98) target = $region12
      $region11: #{l_spa.1} parent=5 // pred_region
        %s102 = ssub.s32 %s15, 1
      $region12: #{l_spa.1} parent=5 // pred_fallthru
        _
      %p103 = scmp.lt.s32.totalorder %s15, 2
      // Predicated region
      $region13: #{l_spa.1} parent=5 // pred_check
        %p104 = pneg %p103
      $region14: #{l_spa.1} parent=5 // pred_check_branch
        %106 = sbr.rel (%p104) target = $region16
      $region15: #{l_spa.1} parent=5 // pred_region
        // Predicated region
        $region17: #{l_spa.1} parent=15 // pred_check
          %p107 = pneg %p35
        $region18: #{l_spa.1} parent=15 // pred_check_branch
          %109 = sbr.rel (%p107) target = $region20
        $region19: #{l_spa.1} parent=15 // pred_region
          %s110 = sand.u32 %s25, 1
          %s111 = scalar_lea.sflag [#allocation3], %s110
          %s112 = sand.u32 %s25, 1
          %s113 = smul.addr %s112, 64
          %s114 = scalar_lea.vmem [#allocation2], %s113
          %s116 = ssub.s32 1024, 1024
          %117 = vsyncadd %s111, %s116
          %s118 = smul.addr %s15, 8
          %s119 = smul.addr %s118, 128
          %s120 = scalar_lea.hbm %s0, %s119
          %s121 = sshll.u32 %s114, 4
          %s122 = int_to_ptr.vmem [resolvable:$true] %s121
          %127 = dma.hbm_to_vmem [thread:$0]  %s120, 1024, %s122, %s111, 128, 128, 8
        $region20: #{l_spa.1} parent=15 // pred_fallthru
          _
        // Predicated region
        $region21: #{l_spa.1} parent=15 // pred_check
          %p128 = pneg %p61
        $region22: #{l_spa.1} parent=15 // pred_check_branch
          %130 = sbr.rel (%p128) target = $region24
        $region23: #{l_spa.1} parent=15 // pred_region
          %s131 = sand.u32 %s51, 1
          %s132 = scalar_lea.sflag [#allocation6], %s131
          %s133 = sand.u32 %s51, 1
          %s134 = smul.addr %s133, 64
          %s135 = scalar_lea.vmem [#allocation5], %s134
          %s137 = ssub.s32 1024, 1024
          %138 = vsyncadd %s132, %s137
          %s139 = smul.addr %s15, 8
          %s140 = smul.addr %s139, 128
          %s141 = scalar_lea.hbm %s1, %s140
          %s142 = sshll.u32 %s135, 4
          %s143 = int_to_ptr.vmem [resolvable:$true] %s142
          %148 = dma.hbm_to_vmem [thread:$0]  %s141, 1024, %s143, %s132, 128, 128, 8
        $region24: #{l_spa.1} parent=15 // pred_fallthru
          _
      $region16: #{l_spa.1} parent=5 // pred_fallthru
        _
      %p149 = scmp.le.s32.totalorder 1, %s15
      %p150 = scmp.lt.s32.totalorder %s15, 3
      %p151 = pnand %p149, %p150
      %p152 = pneg %p151
      // Predicated region
      $region25: #{l_spa.1} parent=5 // pred_check
        _
      $region26: #{l_spa.1} parent=5 // pred_check_branch
        %154 = sbr.rel (%p151) target = $region28
      $region27: #{l_spa.1} parent=5 // pred_region
        %s155 = ssub.s32 %s15, 1
        %s156 = sand.u32 %s28, 1
        %s157 = scalar_lea.sflag [#allocation3], %s156
        %s158 = sand.u32 %s28, 1
        %s159 = smul.addr %s158, 64
        %s160 = scalar_lea.vmem [#allocation2], %s159
        // Predicated region
        $region29: #{l_spa.1} parent=27 // pred_check
          %p161 = pneg %p41
        $region30: #{l_spa.1} parent=27 // pred_check_branch
          %163 = sbr.rel (%p161) target = $region32
        $region31: #{l_spa.1} parent=27 // pred_region
          %164 = dma.done %s157, 1024
        $region32: #{l_spa.1} parent=27 // pred_fallthru
          _
        %s165 = sand.u32 %s54, 1
        %s166 = scalar_lea.sflag [#allocation6], %s165
        %s167 = sand.u32 %s54, 1
        %s168 = smul.addr %s167, 64
        %s169 = scalar_lea.vmem [#allocation5], %s168
        // Predicated region
        $region33: #{l_spa.1} parent=27 // pred_check
          %p170 = pneg %p67
        $region34: #{l_spa.1} parent=27 // pred_check_branch
          %172 = sbr.rel (%p170) target = $region36
        $region35: #{l_spa.1} parent=27 // pred_region
          %173 = dma.done %s166, 1024
        $region36: #{l_spa.1} parent=27 // pred_fallthru
          _
        %s174 = sand.u32 %s28, 1
        %s175 = scalar_lea.sflag [#allocation3], %s174
        %s176 = sand.u32 %s28, 1
        %s177 = smul.addr %s176, 64
        %s178 = scalar_lea.vmem [#allocation2], %s177
        %p179 = pneg %p41
        %p180 = pneg %p38
        %s181 = sand.u32 %s54, 1
        %s182 = scalar_lea.sflag [#allocation6], %s181
        %s183 = sand.u32 %s54, 1
        %s184 = smul.addr %s183, 64
        %s185 = scalar_lea.vmem [#allocation5], %s184
        %p186 = pneg %p67
        %p187 = pneg %p64
        %p188 = pneg %p88
        %p189 = pneg %p85
        %v190 = vld [vmem:[%s160] sm:$0xff]
        %v191 = vld [vmem:[%s160 + $0x8] sm:$0xff]
        %v192 = vld [vmem:[%s160 + $0x10] sm:$0xff]
        %v193 = vld [vmem:[%s160 + $0x18] sm:$0xff]
        %v194 = vld [vmem:[%s160 + $0x20] sm:$0xff]
        %v195 = vld [vmem:[%s160 + $0x28] sm:$0xff]
        %v196 = vld [vmem:[%s160 + $0x30] sm:$0xff]
        %v197 = vld [vmem:[%s160 + $0x38] sm:$0xff]
        %v198 = vld [vmem:[%s169] sm:$0xff]
        %v199 = vld [vmem:[%s169 + $0x8] sm:$0xff]
        %v200 = vld [vmem:[%s169 + $0x10] sm:$0xff]
        %v201 = vld [vmem:[%s169 + $0x18] sm:$0xff]
        %v202 = vld [vmem:[%s169 + $0x20] sm:$0xff]
        %v203 = vld [vmem:[%s169 + $0x28] sm:$0xff]
        %v204 = vld [vmem:[%s169 + $0x30] sm:$0xff]
        %v205 = vld [vmem:[%s169 + $0x38] sm:$0xff]
        %v206 = vsub.f32 %v190, %v198
        %v207 = vsub.f32 %v191, %v199
        %v208 = vsub.f32 %v192, %v200
        %v209 = vsub.f32 %v193, %v201
        %v210 = vsub.f32 %v194, %v202
        %v211 = vsub.f32 %v195, %v203
        %v212 = vsub.f32 %v196, %v204
        %v213 = vsub.f32 %v197, %v205
        %vm214 = vcmask 130048
        %v215 = vsel %vm214, %v206, 0.0
        %v216 = vsel %vm214, %v208, 0.0
        %v217 = vadd.f32 %v215, %v216
        %v218 = vsel %vm214, %v210, 0.0
        %v219 = vadd.f32 %v217, %v218
        %v220 = vsel %vm214, %v212, 0.0
        %v221 = vadd.f32 %v219, %v220
        %v222 = vsel %vm214, %v207, 0.0
        %v223 = vsel %vm214, %v209, 0.0
        %v224 = vadd.f32 %v222, %v223
        %v225 = vsel %vm214, %v211, 0.0
        %v226 = vadd.f32 %v224, %v225
        %v227 = vsel %vm214, %v213, 0.0
        %v228 = vadd.f32 %v226, %v227
        %231 = vrot.lane.b32.xlu0 %v221, 127
        %v232 = vpop.permute.xlu0 %231
        %233 = vrot.lane.b32.xlu0 %v228, 127
        %v234 = vpop.permute.xlu0 %233
        %237 = vrot.lane.b32.xlu0 %v221, 15
        %v238 = vpop.permute.xlu0 %237
        %239 = vrot.lane.b32.xlu0 %v228, 15
        %v240 = vpop.permute.xlu0 %239
        %vm243 = vcmask 121856
        %v244 = vsel %vm243, %v232, %v238
        %v245 = vsel %vm243, %v234, %v240
        %v246 = vadd.f32 %v221, %v244
        %v247 = vadd.f32 %v228, %v245
        %248 = vrot.lane.b32.xlu0 %v221, 126
        %v249 = vpop.permute.xlu0 %248
        %250 = vrot.lane.b32.xlu0 %v228, 126
        %v251 = vpop.permute.xlu0 %250
        %254 = vrot.lane.b32.xlu0 %v221, 14
        %v255 = vpop.permute.xlu0 %254
        %256 = vrot.lane.b32.xlu0 %v228, 14
        %v257 = vpop.permute.xlu0 %256
        %vm260 = vcmask 113664
        %v261 = vsel %vm260, %v249, %v255
        %v262 = vsel %vm260, %v251, %v257
        %v263 = vadd.f32 %v246, %v261
        %v264 = vadd.f32 %v247, %v262
        %265 = vrot.lane.b32.xlu0 %v221, 125
        %v266 = vpop.permute.xlu0 %265
        %267 = vrot.lane.b32.xlu0 %v228, 125
        %v268 = vpop.permute.xlu0 %267
        %271 = vrot.lane.b32.xlu0 %v221, 13
        %v272 = vpop.permute.xlu0 %271
        %273 = vrot.lane.b32.xlu0 %v228, 13
        %v274 = vpop.permute.xlu0 %273
        %vm277 = vcmask 105472
        %v278 = vsel %vm277, %v266, %v272
        %v279 = vsel %vm277, %v268, %v274
        %v280 = vadd.f32 %v263, %v278
        %v281 = vadd.f32 %v264, %v279
        %vm284 = vcmask 1046528
        %v285 = vrot.slane %v280, 1
        %v286 = vrot.slane %v281, 1
        %v287 = vsel %vm284, %v285, %v286
        %v291 = vsel %vm284, %v286, %v285
        %v292 = vadd.f32 %v280, %v287
        %v293 = vadd.f32 %v281, %v291
        %vm294 = vcmask 1045504
        %v295 = vrot.slane %v280, 2
        %v296 = vrot.slane %v281, 2
        %v297 = vsel %vm294, %v295, %v296
        %v301 = vsel %vm294, %v296, %v295
        %v302 = vadd.f32 %v292, %v297
        %v303 = vadd.f32 %v293, %v301
        %vm304 = vcmask 1044480
        %v305 = vrot.slane %v280, 3
        %v306 = vrot.slane %v281, 3
        %v307 = vsel %vm304, %v305, %v306
        %v311 = vsel %vm304, %v306, %v305
        %v312 = vadd.f32 %v302, %v307
        %v313 = vadd.f32 %v303, %v311
        %v314 = vmul.f32 %v312, 0.015625
        %v315 = vmul.f32 %v313, 0.015625
        %v316 = vlaneseq
        %v317 = vand.u32 %v316, 127
        %v318 = vlaneseq
        %v319 = vshrl.u32 %v318, 7
        %v320 = vadd.s32 %v319, 8
        %vm321 = vcmp.lt.s32.totalorder %v317, 4
        %324 = vrot.lane.b32.xlu0 %v314, 116
        %v325 = vpop.permute.xlu0 %324
        %326 = vrot.lane.b32.xlu0 %v315, 116
        %v327 = vpop.permute.xlu0 %326
        %330 = vrot.lane.b32.xlu0 %v314, 4
        %v331 = vpop.permute.xlu0 %330
        %332 = vrot.lane.b32.xlu0 %v315, 4
        %v333 = vpop.permute.xlu0 %332
        %vm336 = vcmask 31744
        %v337 = vsel %vm336, %v325, %v331
        %v338 = vsel %vm336, %v327, %v333
        %v339 = vsel %vm321, 0.0, %v337
        %v340 = vsel %vm321, 0.0, %v338
        %vm341 = vcmp.ge.s32.totalorder %v317, 12
        %342 = vrot.lane.b32.xlu0 %v314, 124
        %v343 = vpop.permute.xlu0 %342
        %344 = vrot.lane.b32.xlu0 %v315, 124
        %v345 = vpop.permute.xlu0 %344
        %348 = vrot.lane.b32.xlu0 %v314, 12
        %v349 = vpop.permute.xlu0 %348
        %350 = vrot.lane.b32.xlu0 %v315, 12
        %v351 = vpop.permute.xlu0 %350
        %vm354 = vcmask 97280
        %v355 = vsel %vm354, %v343, %v349
        %v356 = vsel %vm354, %v345, %v351
        %v357 = vsel %vm341, 0.0, %v355
        %v358 = vsel %vm341, 0.0, %v356
        %vm359 = vcmp.lt.s32.totalorder %v319, 4
        %vm360 = vcmp.lt.s32.totalorder %v320, 4
        %v361 = vrot.slane %v315, 4
        %vm363 = vcmask 1043456
        %v364 = vrot.slane %v314, 4
        %v365 = vsel %vm363, %v364, %v361
        %v368 = vsel %vm363, %v361, %v364
        %v369 = vsel %vm359, 0.0, %v368
        %v370 = vsel %vm360, 0.0, %v365
        %vm371 = vcmp.ge.s32.totalorder %v319, 12
        %vm372 = vcmp.ge.s32.totalorder %v320, 12
        %v373 = vsel %vm371, 0.0, %v365
        %v374 = vsel %vm372, 0.0, %v368
        %v375 = vsub.f32 %v314, %v339
        %v376 = vsub.f32 %v315, %v340
        %v377 = vmul.f32 %v375, %v375
        %v378 = vmul.f32 %v376, %v376
        %v379 = vsub.f32 %v314, %v357
        %v380 = vsub.f32 %v315, %v358
        %v381 = vmul.f32 %v379, %v379
        %v382 = vmul.f32 %v380, %v380
        %v383 = vadd.f32 %v377, %v381
        %v384 = vadd.f32 %v378, %v382
        %v385 = vsub.f32 %v314, %v369
        %v386 = vsub.f32 %v315, %v370
        %v387 = vmul.f32 %v385, %v385
        %v388 = vmul.f32 %v386, %v386
        %v389 = vadd.f32 %v383, %v387
        %v390 = vadd.f32 %v384, %v388
        %v391 = vsub.f32 %v314, %v373
        %v392 = vsub.f32 %v315, %v374
        %v393 = vmul.f32 %v391, %v391
        %v394 = vmul.f32 %v392, %v392
        %v395 = vadd.f32 %v389, %v393
        %v396 = vadd.f32 %v390, %v394
        %vm397 = vcmp.lt.s32.totalorder %v317, 0
        %v398 = vsub.s32 0, %v317
        %v399 = vsel %vm397, %v398, %v317
        %v400 = vshrl.u32 %v399, 2
        %v401 = vand.u32 %v399, 3
        %v402 = vsub.s32 0, %v401
        %v403 = vsel %vm397, %v402, %v401
        %vm404 = vcmp.ne.s32.totalorder %v403, 0
        %vm405 = vcmp.lt.s32.totalorder %v403, 0
        %vm406 = vmand %vm405, %vm404
        %v407 = vadd.s32 %v403, 4
        %v408 = vsel %vm406, %v407, %v403
        %vm409 = vcmp.eq.s32.totalorder %v408, 0
        %vm410 = vcmp.lt.s32.totalorder %v319, 0
        %v411 = vsub.s32 0, %v319
        %v412 = vsel %vm410, %v411, %v319
        %v413 = vshrl.u32 %v412, 2
        %v414 = vand.u32 %v412, 3
        %v415 = vsub.s32 0, %v414
        %v416 = vsel %vm410, %v415, %v414
        %vm417 = vcmp.lt.s32.totalorder %v320, 0
        %v418 = vsub.s32 0, %v320
        %v419 = vsel %vm417, %v418, %v320
        %v420 = vshrl.u32 %v419, 2
        %v421 = vand.u32 %v419, 3
        %v422 = vsub.s32 0, %v421
        %v423 = vsel %vm417, %v422, %v421
        %vm424 = vcmp.ne.s32.totalorder %v416, 0
        %vm425 = vcmp.ne.s32.totalorder %v423, 0
        %vm426 = vcmp.lt.s32.totalorder %v416, 0
        %vm427 = vcmp.lt.s32.totalorder %v423, 0
        %vm428 = vmand %vm426, %vm424
        %vm429 = vmand %vm427, %vm425
        %v430 = vadd.s32 %v416, 4
        %v431 = vadd.s32 %v423, 4
        %v432 = vsel %vm428, %v430, %v416
        %v433 = vsel %vm429, %v431, %v423
        %vm434 = vcmp.eq.s32.totalorder %v432, 0
        %vm435 = vcmp.eq.s32.totalorder %v433, 0
        %vm436 = vmand %vm409, %vm434
        %vm437 = vmand %vm409, %vm435
        %v438 = vsel %vm436, %v395, 0.0
        %v439 = vsel %vm437, %v396, 0.0
        %v440 = vsel %vm214, %v438, 0.0
        %v441 = vsel %vm214, %v439, 0.0
        %v442 = vadd.f32 %v440, %v441
        %443 = vadd.xlane.f32.xlu0 %v442
        %v444 = vpop.xlane.xlu0 %443
        %v445 = vrot.slane %v444, 4
        %v446 = vadd.f32 %v444, %v445
        %v447 = vrot.slane %v446, 2
        %v448 = vadd.f32 %v446, %v447
        %v449 = vrot.slane %v448, 1
        %v450 = vadd.f32 %v448, %v449
        %s451 = vtos %v450
        %s452 = smul.f32 %s451, 0.03125
        %s453 = scalar_lea.smem [#allocation7], %s20
        %454 = sst [smem:[%s453]] %s452
        // Predicated region
        $region37: #{l_spa.1} parent=27 // pred_check
          %p455 = pneg %p85
        $region38: #{l_spa.1} parent=27 // pred_check_branch
          %457 = sbr.rel (%p455) target = $region40
        $region39: #{l_spa.1} parent=27 // pred_region
          %s459 = ssub.s32 16, 16
          %460 = vsyncadd [#allocation4], %s459
          %s462 = sshll.u32 %s2, 4
          %s463 = int_to_ptr.vmem [resolvable:$true] %s462
          %465 = dma.smem_to_vmem [#allocation7], 16, %s463, [#allocation4]
        $region40: #{l_spa.1} parent=27 // pred_fallthru
          _
        // Predicated region
        $region41: #{l_spa.1} parent=27 // pred_check
          %p466 = pneg %p85
        $region42: #{l_spa.1} parent=27 // pred_check_branch
          %468 = sbr.rel (%p466) target = $region44
        $region43: #{l_spa.1} parent=27 // pred_region
          %469 = dma.done [#allocation4], 16
        $region44: #{l_spa.1} parent=27 // pred_fallthru
          _
        %470 = sfence
      $region28: #{l_spa.1} parent=5 // pred_fallthru
        _
      %p471 = scmp.le.s32.totalorder 2, %s15
      // Predicated region
      $region45: #{l_spa.1} parent=5 // pred_check
        %p472 = pneg %p471
      $region46: #{l_spa.1} parent=5 // pred_check_branch
        %474 = sbr.rel (%p472) target = $region48
      $region47: #{l_spa.1} parent=5 // pred_region
        %s475 = ssub.s32 %s15, 2
      $region48: #{l_spa.1} parent=5 // pred_fallthru
        _
    $region6: #{l_spa.1} parent=1 // loop_footer
      %s19 = sadd.s32 1, %s15
    $region7: #{l_spa.1} parent=1 // loop_footer_branch
      %14 = sbr.rel target = $region3
    $region8: #{l_spa.1} parent=1 // loop_exit
      _
    %476 = vsyncpa [#allocation3], 1
    %s477 = scalar_lea.sflag [#allocation3], 1
    %478 = vsyncpa %s477, 1
    %479 = vsyncpa [#allocation6], 1
    %s480 = scalar_lea.sflag [#allocation6], 1
    %481 = vsyncpa %s480, 1
    %482 = vsyncpa [#allocation4], 1
    %s483 = scalar_lea.sflag [#allocation4], 1
    %484 = vsyncpa %s483, 1

</llo_original>
